<compile_context>
chip_gen: v6e
topology: v6e:2x2x1
jax: 0.10.0
libtpu: 0.0.40
codegen_flags: <defaults>
</compile_context>

<pallas_src>
import functools

import jax
import jax.numpy as jnp
from jax.experimental import pallas as pl
from jax.experimental.pallas import tpu as pltpu


def _round_up(n: int, m: int) -> int:
    return ((n + m - 1) // m) * m


def _fused_mlp_kernel(x_ref, w1_ref, b1_ref, w2_ref, b2_ref, o_ref):
    # Fused hot path, all heads at once:
    #   x(bf16) @ W1_all(bf16) -> f32 acc -> +b1 -> ReLU -> (bf16) @ W2_blockdiag(bf16) -> +b2
    x = x_ref[...].astype(jnp.bfloat16)
    h = jnp.dot(x, w1_ref[...], preferred_element_type=jnp.float32) + b1_ref[...]
    h = jnp.maximum(h, 0.0)
    y = jnp.dot(h.astype(jnp.bfloat16), w2_ref[...],
                preferred_element_type=jnp.float32) + b2_ref[...]
    o_ref[...] = y.astype(o_ref.dtype)


def fused_mlp(x, w1, b1, w2, b2, *, max_batch_tile: int = 512):
    """All classifier heads in one kernel.

    x: (B, D) f32; w1: (D, Hp) bf16; b1: (1, Hp) f32;
    w2: (Hp, Op) bf16 block-diagonal; b2: (1, Op) f32,
    with Hp/Op padded to multiples of 128 (lane-dense, unmasked stores).

    The batch dim is tiled with up to 512-row blocks (multiple of 8 sublanes) and
    marked "parallel" so v7x can shard it across both TensorCores.
    """
    B, D = x.shape
    Hp = w1.shape[1]
    Op = w2.shape[1]

    # Batch tile: multiple of 8 sublanes, <= max_batch_tile; pad B up to a multiple.
    tb = min(max_batch_tile, _round_up(B, 8))
    bp = _round_up(B, tb)
    if bp != B:
        x = jnp.pad(x, ((0, bp - B), (0, 0)))
    grid = (bp // tb,)

    # Explicit VMEM budget (Pallas double-buffers every input/output block).
    itemsize = lambda a: a.dtype.itemsize
    needed = 2 * (
        tb * D * itemsize(x) + tb * Op * 4            # x tile + out tile
        + w1.size * itemsize(w1) + w2.size * itemsize(w2)
        + b1.size * itemsize(b1) + b2.size * itemsize(b2)
    )
    vmem_limit = int(min(max(needed + (2 << 20), 16 << 20), 56 << 20))

    out = pl.pallas_call(
        _fused_mlp_kernel,
        out_shape=jax.ShapeDtypeStruct((bp, Op), jnp.float32),
        grid=grid,
        in_specs=[
            pl.BlockSpec((tb, D), lambda i: (i, 0)),   # x: row-tiled
            pl.BlockSpec((D, Hp), lambda i: (0, 0)),   # W1: grid-invariant
            pl.BlockSpec((1, Hp), lambda i: (0, 0)),   # b1
            pl.BlockSpec((Hp, Op), lambda i: (0, 0)),  # W2 (block-diagonal)
            pl.BlockSpec((1, Op), lambda i: (0, 0)),   # b2
        ],
        out_specs=pl.BlockSpec((tb, Op), lambda i: (i, 0)),
        compiler_params=pltpu.CompilerParams(
            dimension_semantics=("parallel",),
            vmem_limit_bytes=vmem_limit,
        ),
    )(x, w1, b1, w2, b2)
    return out[:B]


class BaselineMLPPallas:
    """Pallas port of BaselineMLP: every head fused into one lane-dense bf16 kernel."""

    def __init__(self, input_size, output_sizes, clf_size_mults=(1,), key=None):
        assert len(clf_size_mults) == 1, "kernel implements the default single hidden layer"
        if key is None:
            key = jax.random.PRNGKey(0)
        self.output_sizes = tuple(output_sizes)
        self.input_size = int(input_size)

        # Per-head params with PyTorch-Linear-like U(-1/sqrt(fan_in), 1/sqrt(fan_in)) init.
        self.params = []
        for out_size in self.output_sizes:
            hidden = clf_size_mults[0] * out_size
            key, k1, k2, k3, k4 = jax.random.split(key, 5)
            lim1 = 1.0 / (input_size ** 0.5)
            lim2 = 1.0 / (hidden ** 0.5)
            w1 = jax.random.uniform(k1, (input_size, hidden), jnp.float32, -lim1, lim1)
            b1 = jax.random.uniform(k2, (1, hidden), jnp.float32, -lim1, lim1)
            w2 = jax.random.uniform(k3, (hidden, out_size), jnp.float32, -lim2, lim2)
            b2 = jax.random.uniform(k4, (1, out_size), jnp.float32, -lim2, lim2)
            self.params.append((w1, b1, w2, b2))

        # ---- Build fused, lane-dense (padded to 128) weight slabs ----
        # (At MXU-bound scale, prefer 256-multiple pads on v6e/v7x; 128 keeps VMEM lean here.)
        hiddens = [clf_size_mults[0] * o for o in self.output_sizes]
        sum_h, sum_o = sum(hiddens), sum(self.output_sizes)
        Hp, Op = _round_up(sum_h, 128), _round_up(sum_o, 128)

        w1_all = jnp.zeros((input_size, Hp), jnp.float32)
        b1_all = jnp.zeros((1, Hp), jnp.float32)
        w2_all = jnp.zeros((Hp, Op), jnp.float32)     # block-diagonal -> heads stay independent
        b2_all = jnp.zeros((1, Op), jnp.float32)

        h_off = o_off = 0
        for (w1, b1, w2, b2), H, O in zip(self.params, hiddens, self.output_sizes):
            w1_all = w1_all.at[:, h_off:h_off + H].set(w1)
            b1_all = b1_all.at[:, h_off:h_off + H].set(b1)
            w2_all = w2_all.at[h_off:h_off + H, o_off:o_off + O].set(w2)
            b2_all = b2_all.at[:, o_off:o_off + O].set(b2)
            h_off += H
            o_off += O

        # bf16 weights (MXU-native operands, half the HBM->VMEM DMA); biases stay f32.
        self.w1_bf16 = w1_all.astype(jnp.bfloat16)
        self.w2_bf16 = w2_all.astype(jnp.bfloat16)
        self.b1_all, self.b2_all = b1_all, b2_all

        # One jitted graph for the whole forward: single dispatch, slicing fused in.
        self._forward = jax.jit(self._forward_impl)

    def _forward_impl(self, doc_emb):
        lead = doc_emb.shape[:-1]            # leading dims, e.g. (1, B)
        x = doc_emb.reshape(-1, self.input_size)
        y = fused_mlp(x, self.w1_bf16, self.b1_all, self.w2_bf16, self.b2_all)  # (rows, Op)
        preds = []
        off = 0
        for o in self.output_sizes:
            p = y[:, off:off + o].reshape(lead + (o,))
            if len(lead) >= 1 and lead[0] == 1:   # torch.squeeze(clf, dim=0): no-op unless size 1
                p = jnp.squeeze(p, axis=0)
            preds.append(p)
            off += o
        return preds

    def __call__(self, doc_emb):
        return self._forward(doc_emb)


def _reference(doc_emb, params):
    """Pure-JAX reference with the same bf16-operand / f32-accumulate numerics."""
    x = doc_emb.reshape(-1, doc_emb.shape[-1])
    out = []
    for (w1, b1, w2, b2) in params:
        h = jnp.dot(x.astype(jnp.bfloat16), w1.astype(jnp.bfloat16),
                    preferred_element_type=jnp.float32) + b1
        h = jnp.maximum(h, 0.0)
        y = jnp.dot(h.astype(jnp.bfloat16), w2.astype(jnp.bfloat16),
                    preferred_element_type=jnp.float32) + b2
        out.append(y)
    return out


if __name__ == "__main__":
    key = jax.random.PRNGKey(0)
    k_model, k_input = jax.random.split(key)

    batch, input_size = 8, 32
    output_sizes = (16, 8)

    model = BaselineMLPPallas(input_size, output_sizes, clf_size_mults=(1,), key=k_model)
    doc_emb = jax.random.normal(k_input, (1, batch, input_size), dtype=jnp.float32)

    preds = model(doc_emb)
    preds = [jax.block_until_ready(p) for p in preds]

    refs = _reference(doc_emb, model.params)
    for p, r, o in zip(preds, refs, output_sizes):
        assert p.shape == (batch, o), (p.shape, (batch, o))
        assert jnp.allclose(p, r, atol=1e-3, rtol=1e-3), float(jnp.max(jnp.abs(p - r)))

    print("KERNEL_OK")
</pallas_src>

<mosaic_0001>
module attributes {stable_mosaic.version = 11 : i64} {
  func.func @_fused_mlp_kernel(%arg0: i32, %arg1: memref<8x32xf32, #tpu.memory_space<vmem>>, %arg2: memref<32x128xbf16, #tpu.memory_space<vmem>>, %arg3: memref<1x128xf32, #tpu.memory_space<vmem>>, %arg4: memref<128x128xbf16, #tpu.memory_space<vmem>>, %arg5: memref<1x128xf32, #tpu.memory_space<vmem>>, %arg6: memref<8x128xf32, #tpu.memory_space<vmem>>) attributes {dimension_semantics = [#tpu.dimension_semantics<parallel>], iteration_bounds = array<i64: 1>, scalar_prefetch = 0 : i64, scratch_operands = 0 : i64, tpu.core_type = #tpu.core_type<tc>, window_params = [{transform_indices = @transform_0, window_bounds = array<i64: 8, 32>}, {pipeline_mode = #tpu.pipeline_mode<synchronous>, transform_indices = @transform_1, window_bounds = array<i64: 32, 128>}, {pipeline_mode = #tpu.pipeline_mode<synchronous>, transform_indices = @transform_2, window_bounds = array<i64: 1, 128>}, {pipeline_mode = #tpu.pipeline_mode<synchronous>, transform_indices = @transform_3, window_bounds = array<i64: 128, 128>}, {pipeline_mode = #tpu.pipeline_mode<synchronous>, transform_indices = @transform_4, window_bounds = array<i64: 1, 128>}, {transform_indices = @transform_5, window_bounds = array<i64: 8, 128>}]} {
    %c0 = arith.constant 0 : index
    %c0_0 = arith.constant 0 : index
    %0 = vector.load %arg1[%c0, %c0_0] : memref<8x32xf32, #tpu.memory_space<vmem>>, vector<8x32xf32>
    %1 = arith.truncf %0 : vector<8x32xf32> to vector<8x32xbf16>
    %c0_1 = arith.constant 0 : index
    %c0_2 = arith.constant 0 : index
    %2 = vector.load %arg2[%c0_1, %c0_2] : memref<32x128xbf16, #tpu.memory_space<vmem>>, vector<32x128xbf16>
    %cst = arith.constant dense<0.000000e+00> : vector<8x128xf32>
    %3 = tpu.matmul %1, %2, %cst {dimension_numbers = #tpu.dot_dimension_numbers<[1], [0], [0], [1], [0, 0, 1, 1], [], []>} : vector<8x32xbf16>, vector<32x128xbf16>, vector<8x128xf32> -> vector<8x128xf32>
    %c0_3 = arith.constant 0 : index
    %c0_4 = arith.constant 0 : index
    %4 = vector.load %arg3[%c0_3, %c0_4] : memref<1x128xf32, #tpu.memory_space<vmem>>, vector<1x128xf32>
    %5 = vector.broadcast %4 : vector<1x128xf32> to vector<8x128xf32>
    %6 = arith.addf %3, %5 : vector<8x128xf32>
    %cst_5 = arith.constant 0.000000e+00 : f32
    %7 = vector.broadcast %cst_5 : f32 to vector<8x128xf32>
    %8 = arith.maximumf %6, %7 : vector<8x128xf32>
    %9 = arith.truncf %8 : vector<8x128xf32> to vector<8x128xbf16>
    %c0_6 = arith.constant 0 : index
    %c0_7 = arith.constant 0 : index
    %10 = vector.load %arg4[%c0_6, %c0_7] : memref<128x128xbf16, #tpu.memory_space<vmem>>, vector<128x128xbf16>
    %cst_8 = arith.constant dense<0.000000e+00> : vector<8x128xf32>
    %11 = tpu.matmul %9, %10, %cst_8 {dimension_numbers = #tpu.dot_dimension_numbers<[1], [0], [0], [1], [0, 0, 1, 1], [], []>} : vector<8x128xbf16>, vector<128x128xbf16>, vector<8x128xf32> -> vector<8x128xf32>
    %c0_9 = arith.constant 0 : index
    %c0_10 = arith.constant 0 : index
    %12 = vector.load %arg5[%c0_9, %c0_10] : memref<1x128xf32, #tpu.memory_space<vmem>>, vector<1x128xf32>
    %13 = vector.broadcast %12 : vector<1x128xf32> to vector<8x128xf32>
    %14 = arith.addf %11, %13 : vector<8x128xf32>
    %c0_11 = arith.constant 0 : index
    %c0_12 = arith.constant 0 : index
    %15 = vector.load %arg6[%c0_11, %c0_12] : memref<8x128xf32, #tpu.memory_space<vmem>>, vector<8x128xf32>
    tpu.vector_store %arg6[%c0_11, %c0_12], %14 {strides = array<i32>} : memref<8x128xf32, #tpu.memory_space<vmem>>, vector<8x128xf32>,
    return
  }
  func.func @transform_0(%arg0: i32) -> (i32, i32) {
    %c0_i32 = arith.constant 0 : i32
    %c0_i32_0 = arith.constant 0 : i32
    return %arg0, %c0_i32 : i32, i32
  }
  func.func @transform_1(%arg0: i32) -> (i32, i32) {
    %c0_i32 = arith.constant 0 : i32
    %c0_i32_0 = arith.constant 0 : i32
    %c0_i32_1 = arith.constant 0 : i32
    return %c0_i32, %c0_i32_0 : i32, i32
  }
  func.func @transform_2(%arg0: i32) -> (i32, i32) {
    %c0_i32 = arith.constant 0 : i32
    %c0_i32_0 = arith.constant 0 : i32
    %c0_i32_1 = arith.constant 0 : i32
    return %c0_i32, %c0_i32_0 : i32, i32
  }
  func.func @transform_3(%arg0: i32) -> (i32, i32) {
    %c0_i32 = arith.constant 0 : i32
    %c0_i32_0 = arith.constant 0 : i32
    %c0_i32_1 = arith.constant 0 : i32
    return %c0_i32, %c0_i32_0 : i32, i32
  }
  func.func @transform_4(%arg0: i32) -> (i32, i32) {
    %c0_i32 = arith.constant 0 : i32
    %c0_i32_0 = arith.constant 0 : i32
    %c0_i32_1 = arith.constant 0 : i32
    return %c0_i32, %c0_i32_0 : i32, i32
  }
  func.func @transform_5(%arg0: i32) -> (i32, i32) {
    %c0_i32 = arith.constant 0 : i32
    %c0_i32_0 = arith.constant 0 : i32
    return %arg0, %c0_i32 : i32, i32
  }
}

</mosaic_0001>

<llo_original>
// kernel: _forward_impl.1
$region0: #{_forward_impl.1}
  #allocation0 [shape = 'u32[]', space=smem, size = 0x4, offset = 0x4, fixed_abs, tag = 'smem constant byte address 0x4 - core index']
  #allocation1 [shape = 'u32[144,128]{1,0:T(1,128)}', space=vmem, size = 0x12000, scoped, tag = 'internal scratch']
  %s0 = inlined_call_operand.hbm [shape: f32[8,32], index: 0, kind: input, shape index: {}]
  %s1 = inlined_call_operand.hbm [shape: bf16[32,128], index: 1, kind: input, shape index: {}]
  %s2 = inlined_call_operand.vmem [shape: f32[1,128], index: 2, kind: input, shape index: {}]
  %s3 = inlined_call_operand.hbm [shape: bf16[128,128], index: 3, kind: input, shape index: {}]
  %s4 = inlined_call_operand.vmem [shape: f32[1,128], index: 4, kind: input, shape index: {}]
  %s5 = inlined_call_operand.vmem [shape: f32[8,128], index: 5, kind: output, shape index: {}]
  %s6 = sld [smem:[#allocation0]]
  $region42: #{_forward_impl.1} parent=0
    _
  %s8 = ssub.s32 1, %s6
  %s9 = scalar_select 0, %s8, %s6
  $region1: #{_forward_impl.1} parent=0
    #allocation2 [shape = 'u8[4096]{0}', space=vmem, size = 0x1000, scoped, tag = 'input window, operand 0, single buffered']
    #allocation3 [shape = 's32[1]{0}', space=sflag, size = 0x4, scoped, tag = 'scoped memory for _forward_impl.1']
    #allocation4 [shape = 'u8[8192]{0}', space=vmem, size = 0x2000, scoped, tag = 'input window, operand 1, single buffered']
    #allocation5 [shape = 's32[1]{0}', space=sflag, size = 0x4, scoped, tag = 'scoped memory for _forward_impl.1']
    #allocation6 [shape = 'u8[32768]{0}', space=vmem, size = 0x8000, scoped, tag = 'input window, operand 3, single buffered']
    %10 = vsyncpa [#allocation3], 0
    %11 = vsyncpa [#allocation5], 0
    // Predicated region
    $region2: #{_forward_impl.1} parent=1 // pred_check
      _
    $region3: #{_forward_impl.1} parent=1 // pred_check_branch
      %13 = sbr.rel (0) target = $region5
    $region4: #{_forward_impl.1} parent=1 // pred_region
      %s15 = ssub.s32 128, 128
      %16 = vsyncadd [#allocation3], %s15
      %s18 = sshll.u32 [#allocation2], 4
      %s19 = int_to_ptr.vmem [resolvable:$true] %s18
      %21 = dma.hbm_to_vmem [thread:$0]  %s0, 128, %s19, [#allocation3]
    $region5: #{_forward_impl.1} parent=1 // pred_fallthru
      _
    // Predicated region
    $region6: #{_forward_impl.1} parent=1 // pred_check
      _
    $region7: #{_forward_impl.1} parent=1 // pred_check_branch
      %23 = sbr.rel (0) target = $region9
    $region8: #{_forward_impl.1} parent=1 // pred_region
      %s25 = ssub.s32 256, 256
      %26 = vsyncadd [#allocation5], %s25
      %s27 = sshll.u32 [#allocation4], 4
      %s28 = int_to_ptr.vmem [resolvable:$true] %s27
      %33 = dma.hbm_to_vmem [thread:$0]  %s1, 256, %s28, [#allocation5], 64, 64, 4
    $region9: #{_forward_impl.1} parent=1 // pred_fallthru
      _
    // Predicated region
    $region10: #{_forward_impl.1} parent=1 // pred_check
      _
    $region11: #{_forward_impl.1} parent=1 // pred_check_branch
      %35 = sbr.rel (0) target = $region13
    $region12: #{_forward_impl.1} parent=1 // pred_region
      _
    $region13: #{_forward_impl.1} parent=1 // pred_fallthru
      _
    // Predicated region
    $region14: #{_forward_impl.1} parent=1 // pred_check
      _
    $region15: #{_forward_impl.1} parent=1 // pred_check_branch
      %37 = sbr.rel (0) target = $region17
    $region16: #{_forward_impl.1} parent=1 // pred_region
      %s39 = ssub.s32 1024, 1024
      %40 = vsyncadd [#allocation5], %s39
      %s41 = sshll.u32 [#allocation6], 4
      %s42 = int_to_ptr.vmem [resolvable:$true] %s41
      %47 = dma.hbm_to_vmem [thread:$0]  %s3, 1024, %s42, [#allocation5], 64, 64, 4
    $region17: #{_forward_impl.1} parent=1 // pred_fallthru
      _
    // Predicated region
    $region18: #{_forward_impl.1} parent=1 // pred_check
      _
    $region19: #{_forward_impl.1} parent=1 // pred_check_branch
      %49 = sbr.rel (0) target = $region21
    $region20: #{_forward_impl.1} parent=1 // pred_region
      _
    $region21: #{_forward_impl.1} parent=1 // pred_fallthru
      _
    // Predicated region
    $region22: #{_forward_impl.1} parent=1 // pred_check
      _
    $region23: #{_forward_impl.1} parent=1 // pred_check_branch
      %51 = sbr.rel (0) target = $region25
    $region24: #{_forward_impl.1} parent=1 // pred_region
      %52 = dma.done [#allocation3], 128
    $region25: #{_forward_impl.1} parent=1 // pred_fallthru
      _
    // Predicated region
    $region26: #{_forward_impl.1} parent=1 // pred_check
      _
    $region27: #{_forward_impl.1} parent=1 // pred_check_branch
      %54 = sbr.rel (0) target = $region29
    $region28: #{_forward_impl.1} parent=1 // pred_region
      %55 = dma.done [#allocation5], 256
    $region29: #{_forward_impl.1} parent=1 // pred_fallthru
      _
    // Predicated region
    $region30: #{_forward_impl.1} parent=1 // pred_check
      _
    $region31: #{_forward_impl.1} parent=1 // pred_check_branch
      %57 = sbr.rel (0) target = $region33
    $region32: #{_forward_impl.1} parent=1 // pred_region
      %58 = dma.done [#allocation5], 1024
    $region33: #{_forward_impl.1} parent=1 // pred_fallthru
      _
    %v60 = vld [vmem:[#allocation2] sm:$0xff]
    %v61 = vpack.c.bf16 %v60, %v60
    %v62 = vld [vmem:[#allocation4] sm:$0xf]
    %v63 = vld [vmem:[#allocation4 + $0x4] sm:$0xf]
    %v64 = vld [vmem:[#allocation4 + $0x8] sm:$0xf]
    %v65 = vld [vmem:[#allocation4 + $0xc] sm:$0xf]
    %v66 = vld [vmem:[%s2] sm:$0x1]
    %v68 = vlaneseq
    %v69 = vshrl.u32 %v68, 7
    %v70 = vsub.s32 0, %v69
    %v71 = vrot.slane %v66, %v70
    %v77 = vunpack.c.l.b16 %v62
    %v78 = vunpack.c.l.b16 %v63
    %v79 = vunpack.c.l.b16 %v64
    %v80 = vunpack.c.l.b16 %v65
    %v81 = vpack.c.b16 %v78, %v77
    %v82 = vpack.c.b16 %v80, %v79
    %vm85 = vcmask 261120
    %v87 = vsel %vm85, %v61, 0
    %89 = vmatprep.subr.bf16.mxu0 0
    %90 = vmatpush1.bf16.msra.mxu0 0
    %91 = vmatprep.subr.bf16.mxu0 0
    %92 = vmatpush1.bf16.msra.mxu0 0
    %93 = vmatprep.subr.bf16.mxu0 0
    %94 = vmatpush1.bf16.msra.mxu0 0
    %95 = vmatprep.subr.bf16.mxu0 0
    %96 = vmatpush1.bf16.msra.mxu0 0
    %97 = vmatprep.subr.bf16.mxu0 0
    %98 = vmatpush1.bf16.msra.mxu0 0
    %99 = vmatprep.subr.bf16.mxu0 0
    %100 = vmatpush1.bf16.msra.mxu0 0
    %101 = vmatprep.subr.bf16.mxu0 0
    %102 = vmatpush1.bf16.msra.mxu0 %v82
    %103 = vmatprep.subr.bf16.mxu0 0
    %104 = vmatpush1.bf16.msra.mxu0 %v81
    %105 = vmatprep.subr.bf16.mxu0 0
    %106 = vmatpush2.bf16.msra.mxu0 0
    %107 = vmatprep.subr.bf16.mxu0 0
    %108 = vmatpush2.bf16.msra.mxu0 0
    %109 = vmatprep.subr.bf16.mxu0 0
    %110 = vmatpush2.bf16.msra.mxu0 0
    %111 = vmatprep.subr.bf16.mxu0 0
    %112 = vmatpush2.bf16.msra.mxu0 0
    %113 = vmatprep.subr.bf16.mxu0 0
    %114 = vmatpush2.bf16.msra.mxu0 0
    %115 = vmatprep.subr.bf16.mxu0 0
    %116 = vmatpush2.bf16.msra.mxu0 0
    %117 = vmatprep.subr.bf16.mxu0 0
    %118 = vmatpush2.bf16.msra.mxu0 0
    %119 = vmatprep.subr.bf16.mxu0 0
    %120 = vmatpush2.bf16.msra.mxu0 0
    %121 = vmatprep.mubr.bf16.mxu0 0
    %122 = vmatmul.mubr.bf16.gmra.mxu0 %v87
    %v123 = vpop.f32.mrf.mxu0
    %v124 = vadd.f32 %v71, %v123
    %v125 = vpop.f32.mrf.mxu0
    %v126 = vpop.f32.mrf.mxu0
    %v127 = vpop.f32.mrf.mxu0
    %128 = vdwg.mxu0
    %v129 = vmax.f32 %v124, 0.0
    %v130 = vpack.c.bf16 %v129, %v129
    %v131 = vld [vmem:[#allocation6] sm:$0xf]
    %v132 = vld [vmem:[#allocation6 + $0x4] sm:$0xf]
    %v133 = vld [vmem:[#allocation6 + $0x8] sm:$0xf]
    %v134 = vld [vmem:[#allocation6 + $0xc] sm:$0xf]
    %v135 = vld [vmem:[#allocation6 + $0x10] sm:$0xf]
    %v136 = vld [vmem:[#allocation6 + $0x14] sm:$0xf]
    %v137 = vld [vmem:[#allocation6 + $0x18] sm:$0xf]
    %v138 = vld [vmem:[#allocation6 + $0x1c] sm:$0xf]
    %v139 = vld [vmem:[#allocation6 + $0x20] sm:$0xf]
    %v140 = vld [vmem:[#allocation6 + $0x24] sm:$0xf]
    %v141 = vld [vmem:[#allocation6 + $0x28] sm:$0xf]
    %v142 = vld [vmem:[#allocation6 + $0x2c] sm:$0xf]
    %v143 = vld [vmem:[#allocation6 + $0x30] sm:$0xf]
    %v144 = vld [vmem:[#allocation6 + $0x34] sm:$0xf]
    %v145 = vld [vmem:[#allocation6 + $0x38] sm:$0xf]
    %v146 = vld [vmem:[#allocation6 + $0x3c] sm:$0xf]
    %v147 = vld [vmem:[%s4] sm:$0x1]
    %v149 = vlaneseq
    %v150 = vshrl.u32 %v149, 7
    %v151 = vsub.s32 0, %v150
    %v152 = vrot.slane %v147, %v151
    %v170 = vunpack.c.l.b16 %v131
    %v171 = vunpack.c.l.b16 %v132
    %v172 = vunpack.c.l.b16 %v133
    %v173 = vunpack.c.l.b16 %v134
    %v174 = vunpack.c.l.b16 %v135
    %v175 = vunpack.c.l.b16 %v136
    %v176 = vunpack.c.l.b16 %v137
    %v177 = vunpack.c.l.b16 %v138
    %v178 = vunpack.c.l.b16 %v139
    %v179 = vunpack.c.l.b16 %v140
    %v180 = vunpack.c.l.b16 %v141
    %v181 = vunpack.c.l.b16 %v142
    %v182 = vunpack.c.l.b16 %v143
    %v183 = vunpack.c.l.b16 %v144
    %v184 = vunpack.c.l.b16 %v145
    %v185 = vunpack.c.l.b16 %v146
    %v186 = vpack.c.b16 %v171, %v170
    %v187 = vpack.c.b16 %v173, %v172
    %v188 = vpack.c.b16 %v175, %v174
    %v189 = vpack.c.b16 %v177, %v176
    %v190 = vpack.c.b16 %v179, %v178
    %v191 = vpack.c.b16 %v181, %v180
    %v192 = vpack.c.b16 %v183, %v182
    %v193 = vpack.c.b16 %v185, %v184
    %202 = vmatprep.subr.bf16.mxu0 0
    %203 = vmatpush1.bf16.msra.mxu0 %v193
    %204 = vmatprep.subr.bf16.mxu0 0
    %205 = vmatpush1.bf16.msra.mxu0 %v192
    %206 = vmatprep.subr.bf16.mxu0 0
    %207 = vmatpush1.bf16.msra.mxu0 %v191
    %208 = vmatprep.subr.bf16.mxu0 0
    %209 = vmatpush1.bf16.msra.mxu0 %v190
    %210 = vmatprep.subr.bf16.mxu0 0
    %211 = vmatpush1.bf16.msra.mxu0 %v189
    %212 = vmatprep.subr.bf16.mxu0 0
    %213 = vmatpush1.bf16.msra.mxu0 %v188
    %214 = vmatprep.subr.bf16.mxu0 0
    %215 = vmatpush1.bf16.msra.mxu0 %v187
    %216 = vmatprep.subr.bf16.mxu0 0
    %217 = vmatpush1.bf16.msra.mxu0 %v186
    %218 = vmatprep.subr.bf16.mxu0 0
    %219 = vmatpush2.bf16.msra.mxu0 0
    %220 = vmatprep.subr.bf16.mxu0 0
    %221 = vmatpush2.bf16.msra.mxu0 0
    %222 = vmatprep.subr.bf16.mxu0 0
    %223 = vmatpush2.bf16.msra.mxu0 0
    %224 = vmatprep.subr.bf16.mxu0 0
    %225 = vmatpush2.bf16.msra.mxu0 0
    %226 = vmatprep.subr.bf16.mxu0 0
    %227 = vmatpush2.bf16.msra.mxu0 0
    %228 = vmatprep.subr.bf16.mxu0 0
    %229 = vmatpush2.bf16.msra.mxu0 0
    %230 = vmatprep.subr.bf16.mxu0 0
    %231 = vmatpush2.bf16.msra.mxu0 0
    %232 = vmatprep.subr.bf16.mxu0 0
    %233 = vmatpush2.bf16.msra.mxu0 0
    %234 = vmatprep.mubr.bf16.mxu0 0
    %235 = vmatmul.mubr.bf16.gmra.mxu0 %v130
    %v236 = vpop.f32.mrf.mxu0
    %v237 = vadd.f32 %v152, %v236
    %v238 = vpop.f32.mrf.mxu0
    %v239 = vpop.f32.mrf.mxu0
    %v240 = vpop.f32.mrf.mxu0
    %241 = vdwg.mxu0
    %242 = vst [vmem:[%s5] sm:$0xff] %v237
    // Predicated region
    $region34: #{_forward_impl.1} parent=1 // pred_check
      _
    $region35: #{_forward_impl.1} parent=1 // pred_check_branch
      %244 = sbr.rel (0) target = $region37
    $region36: #{_forward_impl.1} parent=1 // pred_region
      _
    $region37: #{_forward_impl.1} parent=1 // pred_fallthru
      _
    // Predicated region
    $region38: #{_forward_impl.1} parent=1 // pred_check
      _
    $region39: #{_forward_impl.1} parent=1 // pred_check_branch
      %246 = sbr.rel (0) target = $region41
    $region40: #{_forward_impl.1} parent=1 // pred_region
      _
    $region41: #{_forward_impl.1} parent=1 // pred_fallthru
      _
    %247 = vsyncpa [#allocation3], 1
    %248 = vsyncpa [#allocation5], 1

</llo_original>
